<compile_context>
chip_gen: v7x
topology: tpu7x:2x2x1
jax: 0.10.0
libtpu: 0.0.40
codegen_flags: <defaults>
</compile_context>

<pallas_src>
import jax
import jax.numpy as jnp
from jax.experimental import pallas as pl
from jax.experimental.pallas import tpu as pltpu


def value_net_kernel(x_ref, w1_ref, b1_ref, w2_ref, b2_ref, wv_ref, bv_ref, o_ref):
    # fc1 (MXU, bf16 inputs, f32 accumulation) + bias + ReLU, with the bf16
    # cast fused into the same elementwise epilogue chain.
    x = x_ref[...].astype(jnp.bfloat16)
    h1 = jnp.dot(x, w1_ref[...], preferred_element_type=jnp.float32)
    h1 = jnp.maximum(h1 + b1_ref[...], 0.0).astype(jnp.bfloat16)

    # fc2 (MXU) + bias + ReLU in f32.
    h2 = jnp.dot(h1, w2_ref[...], preferred_element_type=jnp.float32)
    h2 = jnp.maximum(h2 + b2_ref[...], 0.0)

    # Value head: VPU multiply + XLU cross-lane reduction (avoids a
    # lane-starved (256, 1) MXU matmul); scalar bias lives in SMEM.
    v = jnp.sum(h2 * wv_ref[...], axis=-1, keepdims=True) + bv_ref[0, 0]
    o_ref[...] = v.astype(o_ref.dtype)


def prepare_params(params):
    """One-time, out-of-forward-path weight preparation (bf16 casts etc.)."""
    w1, b1, w2, b2, wv, bv = params
    return (
        w1.astype(jnp.bfloat16),                   # fc1 weights, MXU operand
        b1.reshape(1, -1).astype(jnp.float32),     # fc1 bias
        w2.astype(jnp.bfloat16),                   # fc2 weights, MXU operand
        b2.reshape(1, -1).astype(jnp.float32),     # fc2 bias
        wv.reshape(1, -1).astype(jnp.float32),     # value head as a VPU row
        bv.reshape(1, 1).astype(jnp.float32),      # scalar bias -> SMEM
    )


def _round_up(x, m):
    return ((x + m - 1) // m) * m


def value_network_forward(state, prepared, *, block_b=2048):
    """state: (B, D_in) float32 -> (B, 1) float32, V(s)."""
    w1b, b1, w2b, b2, wv_row, bv_s = prepared
    B, d_in = state.shape
    f1 = w1b.shape[1]
    f2 = w2b.shape[1]

    # Batch tiling: 8-row aligned, capped at block_b, and >= 2 tiles whenever
    # B > 8 so the "parallel" grid axis can use both v7x TensorCores.
    tb = max(8, min(block_b, _round_up(pl.cdiv(B, 2), 8)))
    n_tiles = pl.cdiv(B, tb)

    vmem = pltpu.MemorySpace.VMEM
    out = pl.pallas_call(
        value_net_kernel,
        out_shape=jax.ShapeDtypeStruct((B, 1), jnp.float32),
        grid=(n_tiles,),
        in_specs=[
            # state: streamed per batch tile (double-buffered by Pallas);
            # ragged final tile handled by Pallas masking (no wrapper pad).
            pl.BlockSpec((tb, d_in), lambda i: (i, 0), memory_space=vmem),
            # weights/biases: constant block index => DMA'd once, VMEM-resident.
            pl.BlockSpec((d_in, f1), lambda i: (0, 0), memory_space=vmem),
            pl.BlockSpec((1, f1), lambda i: (0, 0), memory_space=vmem),
            pl.BlockSpec((f1, f2), lambda i: (0, 0), memory_space=vmem),
            pl.BlockSpec((1, f2), lambda i: (0, 0), memory_space=vmem),
            pl.BlockSpec((1, f2), lambda i: (0, 0), memory_space=vmem),
            # scalar value-head bias in SMEM.
            pl.BlockSpec(memory_space=pltpu.MemorySpace.SMEM),
        ],
        out_specs=pl.BlockSpec((tb, 1), lambda i: (i, 0), memory_space=vmem),
        compiler_params=pltpu.CompilerParams(
            dimension_semantics=("parallel",),
            vmem_limit_bytes=32 * 1024 * 1024,
        ),
    )(state, w1b, b1, w2b, b2, wv_row, bv_s)
    return out


def init_params(key, input_dim, fc1_dims=256, fc2_dims=256):
    """Deterministic init mimicking nn.Linear default (U(-1/sqrt(fan_in), +))."""
    ks = jax.random.split(key, 6)

    def linear(kw, kb, fan_in, fan_out):
        bound = 1.0 / jnp.sqrt(fan_in)
        w = jax.random.uniform(kw, (fan_in, fan_out), jnp.float32, -bound, bound)
        b = jax.random.uniform(kb, (1, fan_out), jnp.float32, -bound, bound)
        return w, b

    w1, b1 = linear(ks[0], ks[1], input_dim, fc1_dims)
    w2, b2 = linear(ks[2], ks[3], fc1_dims, fc2_dims)
    wv, bv = linear(ks[4], ks[5], fc2_dims, 1)
    return (w1, b1, w2, b2, wv, bv)


def value_network_ref(state, params):
    w1, b1, w2, b2, wv, bv = params
    h1 = jnp.maximum(state @ w1 + b1, 0.0)
    h2 = jnp.maximum(h1 @ w2 + b2, 0.0)
    return h2 @ wv + bv


# TODO(synk): Adam optimizer state and checkpoint save/load from the PyTorch
# module are host-side training utilities, not part of the forward pass.

if __name__ == "__main__":
    key = jax.random.PRNGKey(0)
    k_param, k_state, k_state2 = jax.random.split(key, 3)

    input_dim = 8          # input_dims = [8]
    fc1_dims = 256
    fc2_dims = 256
    params = init_params(k_param, input_dim, fc1_dims, fc2_dims)
    prepared = prepare_params(params)   # bf16 casts done ONCE, outside forward

    # Small-batch path (single ragged tile, no wrapper-side padding).
    batch = 2
    state = jax.random.normal(k_state, (batch, input_dim), jnp.float32)
    v = jax.block_until_ready(value_network_forward(state, prepared))
    v_ref = value_network_ref(state, params)
    assert v.shape == (batch, 1)
    # bf16 MXU inputs vs. f32 reference -> loosened tolerance.
    assert jnp.allclose(v, v_ref, atol=5e-2, rtol=5e-2)

    # Gridded path: 3 tiles of 128 rows, ragged final tile (rows 256..299).
    batch2 = 300
    state2 = jax.random.normal(k_state2, (batch2, input_dim), jnp.float32)
    v2 = jax.block_until_ready(value_network_forward(state2, prepared, block_b=128))
    v2_ref = value_network_ref(state2, params)
    assert v2.shape == (batch2, 1)
    assert jnp.allclose(v2, v2_ref, atol=5e-2, rtol=5e-2)

    print("KERNEL_OK")
</pallas_src>

<mosaic_0001>
module attributes {stable_mosaic.version = 11 : i64} {
  func.func @value_net_kernel(%arg0: i32, %arg1: memref<8x8xf32, #tpu.memory_space<vmem>>, %arg2: memref<8x256xbf16, #tpu.memory_space<vmem>>, %arg3: memref<1x256xf32, #tpu.memory_space<vmem>>, %arg4: memref<256x256xbf16, #tpu.memory_space<vmem>>, %arg5: memref<1x256xf32, #tpu.memory_space<vmem>>, %arg6: memref<1x256xf32, #tpu.memory_space<vmem>>, %arg7: memref<1x1xf32, #tpu.memory_space<smem>>, %arg8: memref<8x1xf32, #tpu.memory_space<vmem>>) attributes {dimension_semantics = [#tpu.dimension_semantics<parallel>], iteration_bounds = array<i64: 1>, scalar_prefetch = 0 : i64, scratch_operands = 0 : i64, tpu.core_type = #tpu.core_type<tc>, window_params = [{transform_indices = @transform_0, window_bounds = array<i64: 8, 8>}, {pipeline_mode = #tpu.pipeline_mode<synchronous>, transform_indices = @transform_1, window_bounds = array<i64: 8, 256>}, {pipeline_mode = #tpu.pipeline_mode<synchronous>, transform_indices = @transform_2, window_bounds = array<i64: 1, 256>}, {pipeline_mode = #tpu.pipeline_mode<synchronous>, transform_indices = @transform_3, window_bounds = array<i64: 256, 256>}, {pipeline_mode = #tpu.pipeline_mode<synchronous>, transform_indices = @transform_4, window_bounds = array<i64: 1, 256>}, {pipeline_mode = #tpu.pipeline_mode<synchronous>, transform_indices = @transform_5, window_bounds = array<i64: 1, 256>}, {transform_indices = @transform_6, window_bounds = array<i64: 1, 1>}, {transform_indices = @transform_7, window_bounds = array<i64: 8, 1>}]} {
    %c0 = arith.constant 0 : index
    %c0_0 = arith.constant 0 : index
    %0 = vector.load %arg1[%c0, %c0_0] : memref<8x8xf32, #tpu.memory_space<vmem>>, vector<8x8xf32>
    %1 = arith.truncf %0 : vector<8x8xf32> to vector<8x8xbf16>
    %c0_1 = arith.constant 0 : index
    %c0_2 = arith.constant 0 : index
    %2 = vector.load %arg2[%c0_1, %c0_2] : memref<8x256xbf16, #tpu.memory_space<vmem>>, vector<8x256xbf16>
    %cst = arith.constant dense<0.000000e+00> : vector<8x256xf32>
    %3 = tpu.matmul %1, %2, %cst {dimension_numbers = #tpu.dot_dimension_numbers<[1], [0], [0], [1], [0, 0, 1, 1], [], []>} : vector<8x8xbf16>, vector<8x256xbf16>, vector<8x256xf32> -> vector<8x256xf32>
    %c0_3 = arith.constant 0 : index
    %c0_4 = arith.constant 0 : index
    %4 = vector.load %arg3[%c0_3, %c0_4] : memref<1x256xf32, #tpu.memory_space<vmem>>, vector<1x256xf32>
    %5 = vector.broadcast %4 : vector<1x256xf32> to vector<8x256xf32>
    %6 = arith.addf %3, %5 : vector<8x256xf32>
    %cst_5 = arith.constant 0.000000e+00 : f32
    %7 = vector.broadcast %cst_5 : f32 to vector<8x256xf32>
    %8 = arith.maximumf %6, %7 : vector<8x256xf32>
    %9 = arith.truncf %8 : vector<8x256xf32> to vector<8x256xbf16>
    %c0_6 = arith.constant 0 : index
    %c0_7 = arith.constant 0 : index
    %10 = vector.load %arg4[%c0_6, %c0_7] : memref<256x256xbf16, #tpu.memory_space<vmem>>, vector<256x256xbf16>
    %cst_8 = arith.constant dense<0.000000e+00> : vector<8x256xf32>
    %11 = tpu.matmul %9, %10, %cst_8 {dimension_numbers = #tpu.dot_dimension_numbers<[1], [0], [0], [1], [0, 0, 1, 1], [], []>} : vector<8x256xbf16>, vector<256x256xbf16>, vector<8x256xf32> -> vector<8x256xf32>
    %c0_9 = arith.constant 0 : index
    %c0_10 = arith.constant 0 : index
    %12 = vector.load %arg5[%c0_9, %c0_10] : memref<1x256xf32, #tpu.memory_space<vmem>>, vector<1x256xf32>
    %13 = vector.broadcast %12 : vector<1x256xf32> to vector<8x256xf32>
    %14 = arith.addf %11, %13 : vector<8x256xf32>
    %cst_11 = arith.constant 0.000000e+00 : f32
    %15 = vector.broadcast %cst_11 : f32 to vector<8x256xf32>
    %16 = arith.maximumf %14, %15 : vector<8x256xf32>
    %c0_12 = arith.constant 0 : index
    %c0_13 = arith.constant 0 : index
    %17 = vector.load %arg6[%c0_12, %c0_13] : memref<1x256xf32, #tpu.memory_space<vmem>>, vector<1x256xf32>
    %18 = vector.broadcast %17 : vector<1x256xf32> to vector<8x256xf32>
    %19 = arith.mulf %16, %18 : vector<8x256xf32>
    %cst_14 = arith.constant dense<0.000000e+00> : vector<8xf32>
    %20 = vector.multi_reduction <add>, %19, %cst_14 [1] : vector<8x256xf32> to vector<8xf32>
    %21 = vector.shape_cast %20 : vector<8xf32> to vector<8x1xf32>
    %c0_15 = arith.constant 0 : index
    %c0_16 = arith.constant 0 : index
    %22 = memref.load %arg7[%c0_15, %c0_16] : memref<1x1xf32, #tpu.memory_space<smem>>
    %23 = vector.broadcast %22 : f32 to vector<8x1xf32>
    %24 = arith.addf %21, %23 : vector<8x1xf32>
    %c0_17 = arith.constant 0 : index
    %c0_18 = arith.constant 0 : index
    %25 = vector.load %arg8[%c0_17, %c0_18] : memref<8x1xf32, #tpu.memory_space<vmem>>, vector<8x1xf32>
    tpu.vector_store %arg8[%c0_17, %c0_18], %24 {strides = array<i32>} : memref<8x1xf32, #tpu.memory_space<vmem>>, vector<8x1xf32>,
    return
  }
  func.func @transform_0(%arg0: i32) -> (i32, i32) {
    %c0_i32 = arith.constant 0 : i32
    %c0_i32_0 = arith.constant 0 : i32
    return %arg0, %c0_i32 : i32, i32
  }
  func.func @transform_1(%arg0: i32) -> (i32, i32) {
    %c0_i32 = arith.constant 0 : i32
    %c0_i32_0 = arith.constant 0 : i32
    %c0_i32_1 = arith.constant 0 : i32
    return %c0_i32, %c0_i32_0 : i32, i32
  }
  func.func @transform_2(%arg0: i32) -> (i32, i32) {
    %c0_i32 = arith.constant 0 : i32
    %c0_i32_0 = arith.constant 0 : i32
    %c0_i32_1 = arith.constant 0 : i32
    return %c0_i32, %c0_i32_0 : i32, i32
  }
  func.func @transform_3(%arg0: i32) -> (i32, i32) {
    %c0_i32 = arith.constant 0 : i32
    %c0_i32_0 = arith.constant 0 : i32
    %c0_i32_1 = arith.constant 0 : i32
    return %c0_i32, %c0_i32_0 : i32, i32
  }
  func.func @transform_4(%arg0: i32) -> (i32, i32) {
    %c0_i32 = arith.constant 0 : i32
    %c0_i32_0 = arith.constant 0 : i32
    %c0_i32_1 = arith.constant 0 : i32
    return %c0_i32, %c0_i32_0 : i32, i32
  }
  func.func @transform_5(%arg0: i32) -> (i32, i32) {
    %c0_i32 = arith.constant 0 : i32
    %c0_i32_0 = arith.constant 0 : i32
    %c0_i32_1 = arith.constant 0 : i32
    return %c0_i32, %c0_i32_0 : i32, i32
  }
  func.func @transform_6(%arg0: i32) -> (i32, i32) {
    %c0_i32 = arith.constant 0 : i32
    %c0_i32_0 = arith.constant 0 : i32
    %c0_i32_1 = arith.constant 0 : i32
    return %c0_i32, %c0_i32_0 : i32, i32
  }
  func.func @transform_7(%arg0: i32) -> (i32, i32) {
    %c0_i32 = arith.constant 0 : i32
    %c0_i32_0 = arith.constant 0 : i32
    return %arg0, %c0_i32 : i32, i32
  }
}

</mosaic_0001>

<llo_original>
// kernel: tpu_custom_call.1
$region0: #{tpu_custom_call.1}
  #allocation0 [shape = 'u32[]', space=smem, size = 0x4, offset = 0x4, fixed_abs, tag = 'smem constant byte address 0x4 - core index']
  #allocation1 [shape = 'u32[144,128]{1,0:T(1,128)}', space=vmem, size = 0x12000, scoped, tag = 'internal scratch']
  #allocation2 [shape = 'f32[1,1]{1,0:T(1,128)S(6)}', space=smem, size = 0x200, scoped, tag = 'scoped memory for tpu_custom_call.1']
  %s0 = inlined_call_operand.vmem [shape: f32[2,8], index: 0, kind: input, shape index: {}]
  %s1 = inlined_call_operand.hbm [shape: bf16[8,256], index: 1, kind: input, shape index: {}]
  %s2 = inlined_call_operand.vmem [shape: f32[1,256], index: 2, kind: input, shape index: {}]
  %s3 = inlined_call_operand.hbm [shape: bf16[256,256], index: 3, kind: input, shape index: {}]
  %s4 = inlined_call_operand.vmem [shape: f32[1,256], index: 4, kind: input, shape index: {}]
  %s5 = inlined_call_operand.vmem [shape: f32[1,256], index: 5, kind: input, shape index: {}]
  %s6 = inlined_call_operand.<no memory space> [shape: f32[1,1], index: 6, kind: input, shape index: {}]
  %s7 = inlined_call_operand.vmem [shape: f32[2,1], index: 7, kind: output, shape index: {}]
  %s8 = sld [smem:[#allocation0]]
  $region76: #{tpu_custom_call.1} parent=0
    _
  %s10 = ssub.s32 1, %s8
  %s11 = scalar_select 0, %s10, %s8
  %12 = sst [smem:[#allocation2]] %s6
  $region1: #{tpu_custom_call.1} parent=0
    #allocation3 [shape = 'u8[4096]{0}', space=vmem, size = 0x1000, scoped, tag = 'input window, operand 1, single buffered']
    #allocation4 [shape = 's32[1]{0}', space=sflag, size = 0x4, scoped, tag = 'scoped memory for tpu_custom_call.1']
    #allocation5 [shape = 'u8[131072]{0}', space=vmem, size = 0x20000, scoped, tag = 'input window, operand 3, single buffered']
    #allocation6 [shape = 's32[1]{0}', space=sflag, size = 0x4, scoped, tag = 'scoped memory for tpu_custom_call.1']
    #allocation7 [shape = 'u8[4096]{0}', space=vmem, size = 0x1000, scoped, tag = 'output window, operand 0, single buffered']
    %13 = vsyncpa [#allocation4], 0
    %14 = vsyncpa [#allocation6], 0
    // Predicated region
    $region2: #{tpu_custom_call.1} parent=1 // pred_check
      _
    $region3: #{tpu_custom_call.1} parent=1 // pred_check_branch
      %16 = sbr.rel (0) target = $region5
    $region4: #{tpu_custom_call.1} parent=1 // pred_region
      _
    $region5: #{tpu_custom_call.1} parent=1 // pred_fallthru
      _
    // Predicated region
    $region6: #{tpu_custom_call.1} parent=1 // pred_check
      _
    $region7: #{tpu_custom_call.1} parent=1 // pred_check_branch
      %18 = sbr.rel (0) target = $region9
    $region8: #{tpu_custom_call.1} parent=1 // pred_region
      %s20 = ssub.s32 128, 128
      %21 = vsyncadd [#allocation4], %s20
      %s23 = sshll.u32 [#allocation3], 4
      %s24 = int_to_ptr.vmem [resolvable:$true] %s23
      %26 = dma.hbm_to_vmem [thread:$0]  %s1, 128, %s24, [#allocation4]
    $region9: #{tpu_custom_call.1} parent=1 // pred_fallthru
      _
    // Predicated region
    $region10: #{tpu_custom_call.1} parent=1 // pred_check
      _
    $region11: #{tpu_custom_call.1} parent=1 // pred_check_branch
      %28 = sbr.rel (0) target = $region13
    $region12: #{tpu_custom_call.1} parent=1 // pred_region
      _
    $region13: #{tpu_custom_call.1} parent=1 // pred_fallthru
      _
    // Predicated region
    $region14: #{tpu_custom_call.1} parent=1 // pred_check
      _
    $region15: #{tpu_custom_call.1} parent=1 // pred_check_branch
      %30 = sbr.rel (0) target = $region17
    $region16: #{tpu_custom_call.1} parent=1 // pred_region
      %s32 = ssub.s32 4096, 4096
      %33 = vsyncadd [#allocation6], %s32
      %s34 = sshll.u32 [#allocation5], 4
      %s35 = int_to_ptr.vmem [resolvable:$true] %s34
      %40 = dma.hbm_to_vmem [thread:$0]  %s3, 4096, %s35, [#allocation6], 128, 128, 8
    $region17: #{tpu_custom_call.1} parent=1 // pred_fallthru
      _
    // Predicated region
    $region18: #{tpu_custom_call.1} parent=1 // pred_check
      _
    $region19: #{tpu_custom_call.1} parent=1 // pred_check_branch
      %42 = sbr.rel (0) target = $region21
    $region20: #{tpu_custom_call.1} parent=1 // pred_region
      _
    $region21: #{tpu_custom_call.1} parent=1 // pred_fallthru
      _
    // Predicated region
    $region22: #{tpu_custom_call.1} parent=1 // pred_check
      _
    $region23: #{tpu_custom_call.1} parent=1 // pred_check_branch
      %44 = sbr.rel (0) target = $region25
    $region24: #{tpu_custom_call.1} parent=1 // pred_region
      _
    $region25: #{tpu_custom_call.1} parent=1 // pred_fallthru
      _
    // Predicated region
    $region26: #{tpu_custom_call.1} parent=1 // pred_check
      _
    $region27: #{tpu_custom_call.1} parent=1 // pred_check_branch
      %46 = sbr.rel (0) target = $region29
    $region28: #{tpu_custom_call.1} parent=1 // pred_region
      _
    $region29: #{tpu_custom_call.1} parent=1 // pred_fallthru
      _
    // Predicated region
    $region30: #{tpu_custom_call.1} parent=1 // pred_check
      _
    $region31: #{tpu_custom_call.1} parent=1 // pred_check_branch
      %48 = sbr.rel (0) target = $region33
    $region32: #{tpu_custom_call.1} parent=1 // pred_region
      %49 = dma.done [#allocation4], 128
    $region33: #{tpu_custom_call.1} parent=1 // pred_fallthru
      _
    // Predicated region
    $region34: #{tpu_custom_call.1} parent=1 // pred_check
      _
    $region35: #{tpu_custom_call.1} parent=1 // pred_check_branch
      %51 = sbr.rel (0) target = $region37
    $region36: #{tpu_custom_call.1} parent=1 // pred_region
      %52 = dma.done [#allocation6], 4096
    $region37: #{tpu_custom_call.1} parent=1 // pred_fallthru
      _
    %v54 = vld [vmem:[%s0] sm:$0xff]
    %v55 = vpack.c.bf16 %v54, %v54
    %v56 = vld [vmem:[#allocation3] sm:$0xff]
    %v57 = vld [vmem:[%s2] sm:$0x3]
    %v59 = vlaneseq
    %v60 = vshrl.u32 %v59, 7
    %v61 = vsub.s32 0, %v60
    %v62 = vrot.slane %v57, %v61
    %v63 = vlaneseq
    %v64 = vshrl.u32 %v63, 7
    %v65 = vsub.s32 1, %v64
    %v66 = vrot.slane %v57, %v65
    %v70 = vunpack.c.l.b16 %v56
    %v71 = vunpack.c.h.b16 %v56
    %v72 = vpack.c.b16 %v70, %v70
    %v73 = vpack.c.b16 %v71, %v71
    %vm74 = vcmask 64512
    %v76 = vsel %vm74, %v55, 0
    %vm78 = vcmask 1043456
    %v80 = vsel %vm78, %v72, 0
    %v83 = vsel %vm78, %v73, 0
    %85 = vmatprep.subr.bf16.mxu0 %v83
    %86 = vmatpush1.bf16.msra.mxu0 %v80
    %87 = vmatprep.subr.bf16.mxu0 0
    %88 = vmatpush1.bf16.msra.mxu0 0
    %89 = vmatprep.subr.bf16.mxu0 0
    %90 = vmatpush1.bf16.msra.mxu0 0
    %91 = vmatprep.subr.bf16.mxu0 0
    %92 = vmatpush1.bf16.msra.mxu0 0
    %93 = vmatprep.subr.bf16.mxu0 0
    %94 = vmatpush1.bf16.msra.mxu0 0
    %95 = vmatprep.subr.bf16.mxu0 0
    %96 = vmatpush1.bf16.msra.mxu0 0
    %97 = vmatprep.subr.bf16.mxu0 0
    %98 = vmatpush1.bf16.msra.mxu0 0
    %99 = vmatprep.subr.bf16.mxu0 0
    %100 = vmatpush1.bf16.msra.mxu0 0
    %101 = vmatprep.subr.bf16.mxu0 0
    %102 = vmatpush1.bf16.msra.mxu0 0
    %103 = vmatprep.subr.bf16.mxu0 0
    %104 = vmatpush1.bf16.msra.mxu0 0
    %105 = vmatprep.subr.bf16.mxu0 0
    %106 = vmatpush1.bf16.msra.mxu0 0
    %107 = vmatprep.subr.bf16.mxu0 0
    %108 = vmatpush1.bf16.msra.mxu0 0
    %109 = vmatprep.subr.bf16.mxu0 0
    %110 = vmatpush1.bf16.msra.mxu0 0
    %111 = vmatprep.subr.bf16.mxu0 0
    %112 = vmatpush1.bf16.msra.mxu0 0
    %113 = vmatprep.subr.bf16.mxu0 0
    %114 = vmatpush1.bf16.msra.mxu0 0
    %115 = vmatprep.subr.bf16.mxu0 0
    %116 = vmatpush1.bf16.msra.mxu0 0
    %117 = vmatprep.mubr.bf16.mxu0 0
    %118 = vmatmul.mubr.bf16.gmra.mrb[0].mxu0 %v76
    %v119 = vpop.f32.mrb[0].mxu0
    %v120 = vadd.f32 %v62, %v119
    %v121 = vpop.f32.mrb[0].mxu0
    %v122 = vadd.f32 %v66, %v121
    %v123 = vpop.f32.mrb[0].mxu0
    %v124 = vpop.f32.mrb[0].mxu0
    %125 = vdwg.mxu0
    %v126 = vmax.f32 %v120, 0.0
    %v127 = vmax.f32 %v122, 0.0
    %v128 = vpack.c.bf16 %v126, %v126
    %v129 = vpack.c.bf16 %v127, %v127
    %v130 = vld [vmem:[#allocation5] sm:$0xff]
    %v131 = vld [vmem:[#allocation5 + $0x8] sm:$0xff]
    %v132 = vld [vmem:[#allocation5 + $0x10] sm:$0xff]
    %v133 = vld [vmem:[#allocation5 + $0x18] sm:$0xff]
    %v134 = vld [vmem:[#allocation5 + $0x20] sm:$0xff]
    %v135 = vld [vmem:[#allocation5 + $0x28] sm:$0xff]
    %v136 = vld [vmem:[#allocation5 + $0x30] sm:$0xff]
    %v137 = vld [vmem:[#allocation5 + $0x38] sm:$0xff]
    %v138 = vld [vmem:[#allocation5 + $0x40] sm:$0xff]
    %v139 = vld [vmem:[#allocation5 + $0x48] sm:$0xff]
    %v140 = vld [vmem:[#allocation5 + $0x50] sm:$0xff]
    %v141 = vld [vmem:[#allocation5 + $0x58] sm:$0xff]
    %v142 = vld [vmem:[#allocation5 + $0x60] sm:$0xff]
    %v143 = vld [vmem:[#allocation5 + $0x68] sm:$0xff]
    %v144 = vld [vmem:[#allocation5 + $0x70] sm:$0xff]
    %v145 = vld [vmem:[#allocation5 + $0x78] sm:$0xff]
    %v146 = vld [vmem:[#allocation5 + $0x80] sm:$0xff]
    %v147 = vld [vmem:[#allocation5 + $0x88] sm:$0xff]
    %v148 = vld [vmem:[#allocation5 + $0x90] sm:$0xff]
    %v149 = vld [vmem:[#allocation5 + $0x98] sm:$0xff]
    %v150 = vld [vmem:[#allocation5 + $0xa0] sm:$0xff]
    %v151 = vld [vmem:[#allocation5 + $0xa8] sm:$0xff]
    %v152 = vld [vmem:[#allocation5 + $0xb0] sm:$0xff]
    %v153 = vld [vmem:[#allocation5 + $0xb8] sm:$0xff]
    %v154 = vld [vmem:[#allocation5 + $0xc0] sm:$0xff]
    %v155 = vld [vmem:[#allocation5 + $0xc8] sm:$0xff]
    %v156 = vld [vmem:[#allocation5 + $0xd0] sm:$0xff]
    %v157 = vld [vmem:[#allocation5 + $0xd8] sm:$0xff]
    %v158 = vld [vmem:[#allocation5 + $0xe0] sm:$0xff]
    %v159 = vld [vmem:[#allocation5 + $0xe8] sm:$0xff]
    %v160 = vld [vmem:[#allocation5 + $0xf0] sm:$0xff]
    %v161 = vld [vmem:[#allocation5 + $0xf8] sm:$0xff]
    %v162 = vld [vmem:[%s4] sm:$0x3]
    %v164 = vlaneseq
    %v165 = vshrl.u32 %v164, 7
    %v166 = vsub.s32 0, %v165
    %v167 = vrot.slane %v162, %v166
    %v168 = vlaneseq
    %v169 = vshrl.u32 %v168, 7
    %v170 = vsub.s32 1, %v169
    %v171 = vrot.slane %v162, %v170
    %v206 = vunpack.c.l.b16 %v130
    %v207 = vunpack.c.h.b16 %v130
    %v208 = vunpack.c.l.b16 %v131
    %v209 = vunpack.c.h.b16 %v131
    %v210 = vunpack.c.l.b16 %v132
    %v211 = vunpack.c.h.b16 %v132
    %v212 = vunpack.c.l.b16 %v133
    %v213 = vunpack.c.h.b16 %v133
    %v214 = vunpack.c.l.b16 %v134
    %v215 = vunpack.c.h.b16 %v134
    %v216 = vunpack.c.l.b16 %v135
    %v217 = vunpack.c.h.b16 %v135
    %v218 = vunpack.c.l.b16 %v136
    %v219 = vunpack.c.h.b16 %v136
    %v220 = vunpack.c.l.b16 %v137
    %v221 = vunpack.c.h.b16 %v137
    %v222 = vunpack.c.l.b16 %v138
    %v223 = vunpack.c.h.b16 %v138
    %v224 = vunpack.c.l.b16 %v139
    %v225 = vunpack.c.h.b16 %v139
    %v226 = vunpack.c.l.b16 %v140
    %v227 = vunpack.c.h.b16 %v140
    %v228 = vunpack.c.l.b16 %v141
    %v229 = vunpack.c.h.b16 %v141
    %v230 = vunpack.c.l.b16 %v142
    %v231 = vunpack.c.h.b16 %v142
    %v232 = vunpack.c.l.b16 %v143
    %v233 = vunpack.c.h.b16 %v143
    %v234 = vunpack.c.l.b16 %v144
    %v235 = vunpack.c.h.b16 %v144
    %v236 = vunpack.c.l.b16 %v145
    %v237 = vunpack.c.h.b16 %v145
    %v238 = vunpack.c.l.b16 %v146
    %v239 = vunpack.c.h.b16 %v146
    %v240 = vunpack.c.l.b16 %v147
    %v241 = vunpack.c.h.b16 %v147
    %v242 = vunpack.c.l.b16 %v148
    %v243 = vunpack.c.h.b16 %v148
    %v244 = vunpack.c.l.b16 %v149
    %v245 = vunpack.c.h.b16 %v149
    %v246 = vunpack.c.l.b16 %v150
    %v247 = vunpack.c.h.b16 %v150
    %v248 = vunpack.c.l.b16 %v151
    %v249 = vunpack.c.h.b16 %v151
    %v250 = vunpack.c.l.b16 %v152
    %v251 = vunpack.c.h.b16 %v152
    %v252 = vunpack.c.l.b16 %v153
    %v253 = vunpack.c.h.b16 %v153
    %v254 = vunpack.c.l.b16 %v154
    %v255 = vunpack.c.h.b16 %v154
    %v256 = vunpack.c.l.b16 %v155
    %v257 = vunpack.c.h.b16 %v155
    %v258 = vunpack.c.l.b16 %v156
    %v259 = vunpack.c.h.b16 %v156
    %v260 = vunpack.c.l.b16 %v157
    %v261 = vunpack.c.h.b16 %v157
    %v262 = vunpack.c.l.b16 %v158
    %v263 = vunpack.c.h.b16 %v158
    %v264 = vunpack.c.l.b16 %v159
    %v265 = vunpack.c.h.b16 %v159
    %v266 = vunpack.c.l.b16 %v160
    %v267 = vunpack.c.h.b16 %v160
    %v268 = vunpack.c.l.b16 %v161
    %v269 = vunpack.c.h.b16 %v161
    %v270 = vpack.c.b16 %v208, %v206
    %v271 = vpack.c.b16 %v209, %v207
    %v272 = vpack.c.b16 %v212, %v210
    %v273 = vpack.c.b16 %v213, %v211
    %v274 = vpack.c.b16 %v216, %v214
    %v275 = vpack.c.b16 %v217, %v215
    %v276 = vpack.c.b16 %v220, %v218
    %v277 = vpack.c.b16 %v221, %v219
    %v278 = vpack.c.b16 %v224, %v222
    %v279 = vpack.c.b16 %v225, %v223
    %v280 = vpack.c.b16 %v228, %v226
    %v281 = vpack.c.b16 %v229, %v227
    %v282 = vpack.c.b16 %v232, %v230
    %v283 = vpack.c.b16 %v233, %v231
    %v284 = vpack.c.b16 %v236, %v234
    %v285 = vpack.c.b16 %v237, %v235
    %v286 = vpack.c.b16 %v240, %v238
    %v287 = vpack.c.b16 %v241, %v239
    %v288 = vpack.c.b16 %v244, %v242
    %v289 = vpack.c.b16 %v245, %v243
    %v290 = vpack.c.b16 %v248, %v246
    %v291 = vpack.c.b16 %v249, %v247
    %v292 = vpack.c.b16 %v252, %v250
    %v293 = vpack.c.b16 %v253, %v251
    %v294 = vpack.c.b16 %v256, %v254
    %v295 = vpack.c.b16 %v257, %v255
    %v296 = vpack.c.b16 %v260, %v258
    %v297 = vpack.c.b16 %v261, %v259
    %v298 = vpack.c.b16 %v264, %v262
    %v299 = vpack.c.b16 %v265, %v263
    %v300 = vpack.c.b16 %v268, %v266
    %v301 = vpack.c.b16 %v269, %v267
    %334 = vmatprep.subr.bf16.mxu0 %v271
    %335 = vmatpush1.bf16.msra.mxu0 %v270
    %336 = vmatprep.subr.bf16.mxu0 %v273
    %337 = vmatpush1.bf16.msra.mxu0 %v272
    %338 = vmatprep.subr.bf16.mxu0 %v275
    %339 = vmatpush1.bf16.msra.mxu0 %v274
    %340 = vmatprep.subr.bf16.mxu0 %v277
    %341 = vmatpush1.bf16.msra.mxu0 %v276
    %342 = vmatprep.subr.bf16.mxu0 %v279
    %343 = vmatpush1.bf16.msra.mxu0 %v278
    %344 = vmatprep.subr.bf16.mxu0 %v281
    %345 = vmatpush1.bf16.msra.mxu0 %v280
    %346 = vmatprep.subr.bf16.mxu0 %v283
    %347 = vmatpush1.bf16.msra.mxu0 %v282
    %348 = vmatprep.subr.bf16.mxu0 %v285
    %349 = vmatpush1.bf16.msra.mxu0 %v284
    %350 = vmatprep.subr.bf16.mxu0 %v287
    %351 = vmatpush1.bf16.msra.mxu0 %v286
    %352 = vmatprep.subr.bf16.mxu0 %v289
    %353 = vmatpush1.bf16.msra.mxu0 %v288
    %354 = vmatprep.subr.bf16.mxu0 %v291
    %355 = vmatpush1.bf16.msra.mxu0 %v290
    %356 = vmatprep.subr.bf16.mxu0 %v293
    %357 = vmatpush1.bf16.msra.mxu0 %v292
    %358 = vmatprep.subr.bf16.mxu0 %v295
    %359 = vmatpush1.bf16.msra.mxu0 %v294
    %360 = vmatprep.subr.bf16.mxu0 %v297
    %361 = vmatpush1.bf16.msra.mxu0 %v296
    %362 = vmatprep.subr.bf16.mxu0 %v299
    %363 = vmatpush1.bf16.msra.mxu0 %v298
    %364 = vmatprep.subr.bf16.mxu0 %v301
    %365 = vmatpush1.bf16.msra.mxu0 %v300
    %366 = vmatprep.mubr.bf16.mxu0 %v129
    %367 = vmatmul.mubr.bf16.gmra.mrb[0].mxu0 %v128
    %v368 = vpop.f32.mrb[0].mxu0
    %v369 = vadd.f32 %v167, %v368
    %v370 = vpop.f32.mrb[0].mxu0
    %v371 = vadd.f32 %v171, %v370
    %v372 = vpop.f32.mrb[0].mxu0
    %v373 = vpop.f32.mrb[0].mxu0
    %374 = vdwg.mxu0
    %v375 = vmax.f32 %v369, 0.0
    %v376 = vmax.f32 %v371, 0.0
    %v377 = vld [vmem:[%s5] sm:$0x3]
    %v379 = vlaneseq
    %v380 = vshrl.u32 %v379, 7
    %v381 = vsub.s32 0, %v380
    %v382 = vrot.slane %v377, %v381
    %v383 = vlaneseq
    %v384 = vshrl.u32 %v383, 7
    %v385 = vsub.s32 1, %v384
    %v386 = vrot.slane %v377, %v385
    %v389 = vmul.f32 %v375, %v382
    %v390 = vmul.f32 %v376, %v386
    %v391 = vadd.f32 %v389, %v390
    %392 = vadd.xlane.f32.xlu0 %v391
    %v393 = vpop.xlane.xlu0 %392
    %s394 = sld [smem:[#allocation2]]
    %v395 = vstv %s394
    %v396 = vadd.f32 %v393, %v395
    %vm397 = vcmask 7168
    %398 = vst.msk [vmem:[#allocation7] sm:$0xff] %vm397, %v396
    // Predicated region
    $region38: #{tpu_custom_call.1} parent=1 // pred_check
      _
    $region39: #{tpu_custom_call.1} parent=1 // pred_check_branch
      %400 = sbr.rel (0) target = $region41
    $region40: #{tpu_custom_call.1} parent=1 // pred_region
      // Predicated region
      $region42: #{tpu_custom_call.1} parent=40 // pred_check
        _
      $region43: #{tpu_custom_call.1} parent=40 // pred_check_branch
        %402 = sbr.rel (0) target = $region45
      $region44: #{tpu_custom_call.1} parent=40 // pred_region
        // Predicated region
        $region46: #{tpu_custom_call.1} parent=44 // pred_check
          _
        $region47: #{tpu_custom_call.1} parent=44 // pred_check_branch
          %404 = sbr.rel target = $region49
        $region48: #{tpu_custom_call.1} parent=44 // pred_region
          // Predicated region
          $region61: #{tpu_custom_call.1} parent=48 // pred_check
            _
          $region62: #{tpu_custom_call.1} parent=48 // pred_check_branch
            %419 = sbr.rel (0) target = $region64
          $region63: #{tpu_custom_call.1} parent=48 // pred_region
            loop: start=0, step=1, limit=1
            $region65: #{tpu_custom_call.1} parent=63 // loop_pre_header
              _
            $region66: #{tpu_custom_call.1} parent=63 // loop_header
              %s422 = sphi 0, %s426
              %p423 = scmp.ge.s32.totalorder %s422, 1
              %s427 = sphi [#allocation7], [#allocation7]
              %s428 = sphi %s7, %s7
            $region67: #{tpu_custom_call.1} parent=63 // loop_header_branch
              %425 = sbr.rel (%p423) target = $region71
            $region68: #{tpu_custom_call.1} parent=63 // loop_body
              %v429 = vld [vmem:[%s427] sm:$0x3]
              %430 = vst [vmem:[%s428] sm:$0x3] %v429
            $region69: #{tpu_custom_call.1} parent=63 // loop_footer
              %s426 = sadd.s32 1, %s422
            $region70: #{tpu_custom_call.1} parent=63 // loop_footer_branch
              %421 = sbr.rel target = $region66
            $region71: #{tpu_custom_call.1} parent=63 // loop_exit
              _
          $region64: #{tpu_custom_call.1} parent=48 // pred_fallthru
            _
        $region49: #{tpu_custom_call.1} parent=44 // pred_fallthru
          _
        // Predicated region
        $region50: #{tpu_custom_call.1} parent=44 // pred_check
          _
        $region51: #{tpu_custom_call.1} parent=44 // pred_check_branch
          %406 = sbr.rel (0) target = $region53
        $region52: #{tpu_custom_call.1} parent=44 // pred_region
          loop: start=0, step=1, limit=1
          $region54: #{tpu_custom_call.1} parent=52 // loop_pre_header
            _
          $region55: #{tpu_custom_call.1} parent=52 // loop_header
            %s409 = sphi 0, %s413
            %p410 = scmp.ge.s32.totalorder %s409, 1
            %s414 = sphi [#allocation7], [#allocation7]
            %s415 = sphi %s7, %s7
          $region56: #{tpu_custom_call.1} parent=52 // loop_header_branch
            %412 = sbr.rel (%p410) target = $region60
          $region57: #{tpu_custom_call.1} parent=52 // loop_body
            %v416 = vld [vmem:[%s414] sm:$0x3]
            %417 = vst [vmem:[%s415] sm:$0x3] %v416
          $region58: #{tpu_custom_call.1} parent=52 // loop_footer
            %s413 = sadd.s32 1, %s409
          $region59: #{tpu_custom_call.1} parent=52 // loop_footer_branch
            %408 = sbr.rel target = $region55
          $region60: #{tpu_custom_call.1} parent=52 // loop_exit
            _
        $region53: #{tpu_custom_call.1} parent=44 // pred_fallthru
          _
      $region45: #{tpu_custom_call.1} parent=40 // pred_fallthru
        _
      %431 = vnop
    $region41: #{tpu_custom_call.1} parent=1 // pred_fallthru
      _
    // Predicated region
    $region72: #{tpu_custom_call.1} parent=1 // pred_check
      _
    $region73: #{tpu_custom_call.1} parent=1 // pred_check_branch
      %433 = sbr.rel (0) target = $region75
    $region74: #{tpu_custom_call.1} parent=1 // pred_region
      _
    $region75: #{tpu_custom_call.1} parent=1 // pred_fallthru
      _
    %434 = vsyncpa [#allocation4], 1
    %435 = vsyncpa [#allocation6], 1

</llo_original>
